<compile_context>
chip_gen: v7x
topology: tpu7x:2x2x1
jax: 0.10.0
libtpu: 0.0.40
codegen_flags: <defaults>
</compile_context>

<pallas_src>
from typing import NamedTuple, Optional

import jax
import jax.numpy as jnp
from jax.experimental import pallas as pl
from jax.experimental.pallas import tpu as pltpu


# ----------------------------- constants ------------------------------------

_VMEM_LIMIT_BYTES = 48 * 1024 * 1024   # passed to the compiler (safe on v5e/v6e/v7x)
_VMEM_TILE_BUDGET = 40 * 1024 * 1024   # conservative working-set budget (v7x: 64 MiB physical)
_SMALL_SHAPE_CUTOFF = 128 * 256 * 256  # M*K*N at or below this -> plain XLA dot


# ------------------------------ kernels -------------------------------------

def _linear_kernel_single_k(x_ref, w_ref, b_ref, o_ref):
    # Whole K reduction in one shot: no accumulator scratch, no init/finalize.
    acc = jnp.dot(x_ref[...], w_ref[...], preferred_element_type=jnp.float32)
    o_ref[...] = (acc + b_ref[...].astype(jnp.float32)).astype(o_ref.dtype)


def _linear_kernel_ktiled_f32_out(x_ref, w_ref, b_ref, o_ref):
    # f32 output: accumulate directly into the resident output block.
    # NOTE: correctness requires K to be the INNERMOST grid axis ("arbitrary")
    # and the output index_map to ignore k.  Do not reorder the grid.
    k = pl.program_id(2)

    @pl.when(k == 0)
    def _init():
        o_ref[...] = jnp.broadcast_to(b_ref[...], o_ref.shape)

    o_ref[...] += jnp.dot(x_ref[...], w_ref[...],
                          preferred_element_type=jnp.float32)


def _linear_kernel_ktiled(x_ref, w_ref, b_ref, o_ref, acc_ref):
    # Narrow output dtype: accumulate in an f32 VMEM scratch, downcast once.
    # NOTE: correctness requires K to be the INNERMOST grid axis ("arbitrary").
    k = pl.program_id(2)

    @pl.when(k == 0)
    def _init():
        acc_ref[...] = jnp.zeros_like(acc_ref)

    acc_ref[...] += jnp.dot(x_ref[...], w_ref[...],
                            preferred_element_type=jnp.float32)

    @pl.when(k == pl.num_programs(2) - 1)
    def _finalize():
        o_ref[...] = (acc_ref[...] + b_ref[...].astype(jnp.float32)
                      ).astype(o_ref.dtype)


# ------------------------- weight pre-packing -------------------------------

class PackedLinear(NamedTuple):
    w: jax.Array   # [Kp, Np], compute dtype, zero-padded to 128 multiples
    b: jax.Array   # [1, Np], f32, zero-padded
    k: int         # original H_in
    n: int         # original H_out


def _round_up(x, m):
    return (x + m - 1) // m * m


def pack_linear_params(w, b, compute_dtype=jnp.bfloat16) -> PackedLinear:
    """Cast + pad the wrapped layer's params ONCE, outside the forward path."""
    K, N = w.shape
    Kp, Np = _round_up(K, 128), _round_up(N, 128)
    wp = w.astype(compute_dtype)
    if (Kp, Np) != (K, N):
        wp = jnp.pad(wp, ((0, Kp - K), (0, Np - N)))
    bp = b.reshape(1, N).astype(jnp.float32)
    if Np != N:
        bp = jnp.pad(bp, ((0, 0), (0, Np - N)))
    return PackedLinear(wp, bp, K, N)


# ---------------------------- tile selection ---------------------------------

def _pick_lane_tile(padded, cap):
    """Largest multiple of 128 that is <= cap and divides `padded`."""
    t = min(cap, padded)
    for cand in range(t, 127, -128):
        if padded % cand == 0:
            return cand
    return 128


def _pick_sublane_tile(padded, cap, align):
    """Largest multiple of `align` that is <= cap and divides `padded`."""
    t = max(align, (min(cap, padded) // align) * align)
    for cand in range(t, align - 1, -align):
        if padded % cand == 0:
            return cand
    return align


def _choose_tiles(M, Kp, Np, compute_dtype, out_dtype, max_k_tile):
    xb = jnp.dtype(compute_dtype).itemsize
    ob = jnp.dtype(out_dtype).itemsize
    # bf16 packs 2 rows per sublane -> align M tiles to 16 for full vregs.
    m_align = 16 if xb == 2 else 8

    mp = _round_up(M, m_align)
    tm = _pick_sublane_tile(mp, 512, m_align)
    tn = _pick_lane_tile(Np, 1024)
    tk = Kp if Kp <= max_k_tile else _pick_lane_tile(Kp, max_k_tile)

    def footprint(tm_, tn_, tk_):
        f = (2 * tm_ * tk_ * xb        # x, double-buffered
             + 2 * tk_ * tn_ * xb      # W, double-buffered
             + 2 * tm_ * tn_ * ob      # output, double-buffered
             + 2 * tn_ * 4)            # bias
        if tk_ < Kp and ob != 4:
            f += tm_ * tn_ * 4         # f32 accumulator scratch
        return f

    # Shrink until the double-buffered working set fits the v7x-safe budget.
    while footprint(tm, tn, tk) > _VMEM_TILE_BUDGET:
        if tk > 512:
            tk = _pick_lane_tile(Kp, ((tk // 2) // 128) * 128)
        elif tn > 128:
            tn = _pick_lane_tile(Np, ((tn // 2) // 128) * 128)
        elif tm > m_align:
            tm = _pick_sublane_tile(mp, max(m_align, tm // 2), m_align)
        else:
            break

    # v7x megacore: make sure the parallel (i, j) grid has >= 2 tiles so both
    # TensorCores get work even for small-M / decode shapes.
    if (mp // tm) * (Np // tn) == 1:
        if Np >= 256:
            tn = _pick_lane_tile(Np, Np - 128)
        elif mp >= 2 * m_align:
            tm = _pick_sublane_tile(mp, mp // 2, m_align)

    return tm, tn, tk


# ------------------------------- forward ------------------------------------

def custom_layer_wrapper_forward(hidden_states, injected_hidden_state,
                                 injection_state, packed: PackedLinear, *,
                                 out_dtype=None,
                                 small_shape_fallback: bool = True,
                                 max_k_tile: int = 2048):
    """CustomLayerWrapper.forward with a Linear (y = x @ W + b) wrapped layer.

    Injection is resolved at TRACE time (injection_state is a Python bool,
    exactly like the PyTorch attribute), so only the selected activation
    stream is ever cast / padded / DMA'd.
    """
    # --- injection substitution (CustomLayerWrapper.forward semantics) ------
    if injection_state and injected_hidden_state is not None:
        x = injected_hidden_state
    else:
        x = hidden_states

    if x.ndim != 3 or x.shape[-1] != packed.k:
        raise ValueError(
            f"hidden_states must be [B, S, {packed.k}]; got {x.shape}")

    B, S, H_in = x.shape
    H_out = packed.n
    M = B * S
    Kp, Np = packed.w.shape
    compute_dtype = packed.w.dtype
    out_dtype = out_dtype if out_dtype is not None else x.dtype

    x2 = x.reshape(M, H_in)
    if x2.dtype != compute_dtype:
        x2 = x2.astype(compute_dtype)

    # --- tiny-layer fast path: pallas_call overhead + 128-lane padding
    #     dominates; XLA's fused dot is strictly faster on all generations.
    if small_shape_fallback and M * Kp * Np <= _SMALL_SHAPE_CUTOFF:
        xk = x2 if H_in == Kp else jnp.pad(x2, ((0, 0), (0, Kp - H_in)))
        y = jnp.dot(xk, packed.w, preferred_element_type=jnp.float32) + packed.b
        return y[:, :H_out].astype(out_dtype).reshape(B, S, H_out)

    tm, tn, tk = _choose_tiles(M, Kp, Np, compute_dtype, out_dtype, max_k_tile)
    Mp = _round_up(M, tm)
    if Mp != M or Kp != H_in:
        x2 = jnp.pad(x2, ((0, Mp - M), (0, Kp - H_in)))

    grid_m, grid_n, num_k = Mp // tm, Np // tn, Kp // tk

    xb = jnp.dtype(compute_dtype).itemsize
    cost = pl.CostEstimate(
        flops=2 * Mp * Kp * Np,
        transcendentals=0,
        bytes_accessed=int(Mp * Kp * xb + Kp * Np * xb
                           + Mp * Np * jnp.dtype(out_dtype).itemsize),
    )

    if num_k == 1:
        # Whole K in one tile: no accumulator scratch, no init/finalize, no
        # per-K-step acc VMEM round trip.
        grid = (grid_m, grid_n)
        in_specs = [
            pl.BlockSpec((tm, tk), lambda i, j: (i, 0)),   # activations
            pl.BlockSpec((tk, tn), lambda i, j: (0, j)),   # W (i-invariant)
            pl.BlockSpec((1, tn), lambda i, j: (0, j)),    # bias
        ]
        out_spec = pl.BlockSpec((tm, tn), lambda i, j: (i, j))
        kernel = _linear_kernel_single_k
        scratch = []
        semantics = ("parallel", "parallel")
    else:
        # K stays tiled: K must remain the INNERMOST ("arbitrary") grid axis.
        grid = (grid_m, grid_n, num_k)
        in_specs = [
            pl.BlockSpec((tm, tk), lambda i, j, k: (i, k)),
            pl.BlockSpec((tk, tn), lambda i, j, k: (k, j)),
            pl.BlockSpec((1, tn), lambda i, j, k: (0, j)),
        ]
        out_spec = pl.BlockSpec((tm, tn), lambda i, j, k: (i, j))
        semantics = ("parallel", "parallel", "arbitrary")
        if jnp.dtype(out_dtype) == jnp.dtype(jnp.float32):
            # Accumulate straight into the resident output block: saves the
            # tm*tn f32 scratch and the final acc->o copy (vst bandwidth).
            kernel = _linear_kernel_ktiled_f32_out
            scratch = []
        else:
            kernel = _linear_kernel_ktiled
            scratch = [pltpu.VMEM((tm, tn), jnp.float32)]

    out = pl.pallas_call(
        kernel,
        out_shape=jax.ShapeDtypeStruct((Mp, Np), out_dtype),
        grid_spec=pltpu.PrefetchScalarGridSpec(
            num_scalar_prefetch=0,
            grid=grid,
            in_specs=in_specs,
            out_specs=out_spec,
            scratch_shapes=scratch,
        ),
        compiler_params=pltpu.CompilerParams(
            dimension_semantics=semantics,
            vmem_limit_bytes=_VMEM_LIMIT_BYTES,
        ),
        cost_estimate=cost,
    )(x2, packed.w, packed.b)

    # No-op when Mp == M and Np == H_out (the common, pre-aligned case).
    return out[:M, :H_out].reshape(B, S, H_out)


class CustomLayerWrapper:
    """JAX analogue of the PyTorch CustomLayerWrapper around a dense layer."""

    def __init__(self, packed: PackedLinear,
                 injected_hidden_state: Optional[jax.Array]):
        self.packed = packed
        self.injected_hidden_state = injected_hidden_state
        self.injection_state = True

    def set_injection_state(self, injection_state: bool):
        self.injection_state = injection_state

    def __call__(self, hidden_states, **kwargs):
        return custom_layer_wrapper_forward(
            hidden_states, self.injected_hidden_state, self.injection_state,
            self.packed, **kwargs)


# TODO(synk): the PyTorch wrapper uses inspect.signature to locate the
# `hidden_states` argument of an arbitrary wrapped layer at runtime; that
# reflection has no Pallas equivalent, so the wrapped layer is fixed here.


if __name__ == "__main__":
    key = jax.random.PRNGKey(0)
    k_x, k_inj, k_w, k_b, k_x2, k_inj2, k_w2, k_b2 = jax.random.split(key, 8)

    # --- Shape 1: B=2, S=8, H=128 (lane-aligned; single-K kernel path). -----
    B, S, H = 2, 8, 128
    hidden_states = jax.random.normal(k_x, (B, S, H), dtype=jnp.float32)
    injected = jax.random.normal(k_inj, (B, S, H), dtype=jnp.float32)
    w = jax.random.normal(k_w, (H, H), dtype=jnp.float32) * 0.02
    b = jax.random.normal(k_b, (1, H), dtype=jnp.float32) * 0.01

    # Weight cast + pad hoisted out of forward: pack once, reuse every call.
    packed_bf16 = pack_linear_params(w, b)                         # default: bf16 MXU inputs
    packed_f32 = pack_linear_params(w, b, compute_dtype=jnp.float32)

    ref_inj = injected.reshape(B * S, H) @ w + b
    ref_noinj = hidden_states.reshape(B * S, H) @ w + b

    wrapper = CustomLayerWrapper(packed_f32, injected)

    # Injection active (default state) -- force the Pallas path at small shapes.
    out_inj = jax.block_until_ready(
        wrapper(hidden_states, small_shape_fallback=False))
    # Injection disabled (set_injection_state(False)).
    wrapper.set_injection_state(False)
    out_noinj = jax.block_until_ready(
        wrapper(hidden_states, small_shape_fallback=False))

    assert jnp.allclose(out_inj.reshape(B * S, H), ref_inj, atol=1e-4, rtol=1e-4)
    assert jnp.allclose(out_noinj.reshape(B * S, H), ref_noinj, atol=1e-4, rtol=1e-4)

    # Default bf16 MXU-input path (f32 accumulation) -- looser tolerance.
    out_bf16 = jax.block_until_ready(custom_layer_wrapper_forward(
        hidden_states, injected, True, packed_bf16, small_shape_fallback=False))
    assert jnp.allclose(out_bf16.reshape(B * S, H), ref_inj, atol=5e-2, rtol=5e-2)

    # Small-shape fallback path (default for tiny layers): plain XLA dot.
    out_fast = jax.block_until_ready(custom_layer_wrapper_forward(
        hidden_states, injected, True, packed_bf16))
    assert jnp.allclose(out_fast.reshape(B * S, H), ref_inj, atol=5e-2, rtol=5e-2)

    # --- Shape 2: H=256 with max_k_tile=128 to exercise the K-tiled kernels:
    #     f32 output accumulates into o_ref; bf16 output uses the f32 scratch.
    H2 = 256
    hidden2 = jax.random.normal(k_x2, (B, S, H2), dtype=jnp.float32)
    injected2 = jax.random.normal(k_inj2, (B, S, H2), dtype=jnp.float32)
    w2 = jax.random.normal(k_w2, (H2, H2), dtype=jnp.float32) * 0.02
    b2 = jax.random.normal(k_b2, (1, H2), dtype=jnp.float32) * 0.01
    packed2_f32 = pack_linear_params(w2, b2, compute_dtype=jnp.float32)
    packed2_bf16 = pack_linear_params(w2, b2)
    ref2 = injected2.reshape(B * S, H2) @ w2 + b2

    out2_f32 = jax.block_until_ready(custom_layer_wrapper_forward(
        hidden2, injected2, True, packed2_f32,
        small_shape_fallback=False, max_k_tile=128))
    assert jnp.allclose(out2_f32.reshape(B * S, H2), ref2, atol=1e-4, rtol=1e-4)

    out2_bf16 = jax.block_until_ready(custom_layer_wrapper_forward(
        hidden2, injected2, True, packed2_bf16, out_dtype=jnp.bfloat16,
        small_shape_fallback=False, max_k_tile=128))
    assert jnp.allclose(out2_bf16.astype(jnp.float32).reshape(B * S, H2),
                        ref2, atol=5e-2, rtol=5e-2)

    print("KERNEL_OK")
</pallas_src>

<mosaic_0001>
module attributes {stable_mosaic.version = 11 : i64} {
  func.func @_linear_kernel_single_k(%arg0: i32, %arg1: i32, %arg2: memref<8x128xf32, #tpu.memory_space<vmem>>, %arg3: memref<128x128xf32, #tpu.memory_space<vmem>>, %arg4: memref<1x128xf32, #tpu.memory_space<vmem>>, %arg5: memref<8x128xf32, #tpu.memory_space<vmem>>) attributes {dimension_semantics = [#tpu.dimension_semantics<parallel>, #tpu.dimension_semantics<parallel>], iteration_bounds = array<i64: 2, 1>, scalar_prefetch = 0 : i64, scratch_operands = 0 : i64, tpu.core_type = #tpu.core_type<tc>, window_params = [{transform_indices = @transform_0, window_bounds = array<i64: 8, 128>}, {transform_indices = @transform_1, window_bounds = array<i64: 128, 128>}, {transform_indices = @transform_2, window_bounds = array<i64: 1, 128>}, {transform_indices = @transform_3, window_bounds = array<i64: 8, 128>}]} {
    %c0 = arith.constant 0 : index
    %c0_0 = arith.constant 0 : index
    %0 = vector.load %arg2[%c0, %c0_0] : memref<8x128xf32, #tpu.memory_space<vmem>>, vector<8x128xf32>
    %c0_1 = arith.constant 0 : index
    %c0_2 = arith.constant 0 : index
    %1 = vector.load %arg3[%c0_1, %c0_2] : memref<128x128xf32, #tpu.memory_space<vmem>>, vector<128x128xf32>
    %cst = arith.constant dense<0.000000e+00> : vector<8x128xf32>
    %2 = tpu.matmul %0, %1, %cst {dimension_numbers = #tpu.dot_dimension_numbers<[1], [0], [0], [1], [0, 0, 1, 1], [], []>} : vector<8x128xf32>, vector<128x128xf32>, vector<8x128xf32> -> vector<8x128xf32>
    %c0_3 = arith.constant 0 : index
    %c0_4 = arith.constant 0 : index
    %3 = vector.load %arg4[%c0_3, %c0_4] : memref<1x128xf32, #tpu.memory_space<vmem>>, vector<1x128xf32>
    %4 = vector.broadcast %3 : vector<1x128xf32> to vector<8x128xf32>
    %5 = arith.addf %2, %4 : vector<8x128xf32>
    %c0_5 = arith.constant 0 : index
    %c0_6 = arith.constant 0 : index
    %6 = vector.load %arg5[%c0_5, %c0_6] : memref<8x128xf32, #tpu.memory_space<vmem>>, vector<8x128xf32>
    tpu.vector_store %arg5[%c0_5, %c0_6], %5 {strides = array<i32>} : memref<8x128xf32, #tpu.memory_space<vmem>>, vector<8x128xf32>,
    return
  }
  func.func @transform_0(%arg0: i32, %arg1: i32) -> (i32, i32) {
    %c0_i32 = arith.constant 0 : i32
    %c0_i32_0 = arith.constant 0 : i32
    return %arg0, %c0_i32 : i32, i32
  }
  func.func @transform_1(%arg0: i32, %arg1: i32) -> (i32, i32) {
    %c0_i32 = arith.constant 0 : i32
    %c0_i32_0 = arith.constant 0 : i32
    return %c0_i32, %arg1 : i32, i32
  }
  func.func @transform_2(%arg0: i32, %arg1: i32) -> (i32, i32) {
    %c0_i32 = arith.constant 0 : i32
    %c0_i32_0 = arith.constant 0 : i32
    return %c0_i32, %arg1 : i32, i32
  }
  func.func @transform_3(%arg0: i32, %arg1: i32) -> (i32, i32) {
    %c0_i32 = arith.constant 0 : i32
    return %arg0, %arg1 : i32, i32
  }
}

</mosaic_0001>

<llo_original>
// kernel: tpu_custom_call.1
$region0: #{tpu_custom_call.1}
  #allocation0 [shape = 'u32[]', space=smem, size = 0x4, offset = 0x4, fixed_abs, tag = 'smem constant byte address 0x4 - core index']
  #allocation1 [shape = 'u32[144,128]{1,0:T(1,128)}', space=vmem, size = 0x12000, scoped, tag = 'internal scratch']
  %s0 = inlined_call_operand.hbm [shape: f32[16,128], index: 0, kind: input, shape index: {}]
  %s1 = inlined_call_operand.hbm [shape: f32[128,128], index: 1, kind: input, shape index: {}]
  %s2 = inlined_call_operand.vmem [shape: f32[1,128], index: 2, kind: input, shape index: {}]
  %s3 = inlined_call_operand.hbm [shape: f32[16,128], index: 3, kind: output, shape index: {}]
  %s4 = sld [smem:[#allocation0]]
  $region53: #{tpu_custom_call.1} parent=0
    _
  %s6 = ssub.s32 1, %s4
  %s7 = scalar_select 0, %s6, %s4
  $region1: #{tpu_custom_call.1} parent=0
    #allocation2 [shape = 'u8[8192]{0}', space=vmem, size = 0x2000, scoped, tag = 'input window, operand 0']
    #allocation3 [shape = 's32[2]{0}', space=sflag, size = 0x8, scoped, tag = 'scoped memory for tpu_custom_call.1']
    #allocation4 [shape = 's32[2]{0}', space=sflag, size = 0x8, scoped, tag = 'scoped memory for tpu_custom_call.1']
    #allocation5 [shape = 'u8[65536]{0}', space=vmem, size = 0x10000, scoped, tag = 'input window, operand 1, single buffered']
    #allocation6 [shape = 's32[1]{0}', space=sflag, size = 0x4, scoped, tag = 'scoped memory for tpu_custom_call.1']
    #allocation7 [shape = 'u8[8192]{0}', space=vmem, size = 0x2000, scoped, tag = 'output window, operand 0']
    %8 = vsyncpa [#allocation3], 0
    %s9 = scalar_lea.sflag [#allocation3], 1
    %10 = vsyncpa %s9, 0
    %11 = vsyncpa [#allocation6], 0
    %12 = vsyncpa [#allocation4], 0
    %s13 = scalar_lea.sflag [#allocation4], 1
    %14 = vsyncpa %s13, 0
    loop: start=0, step=1, limit=4
    $region2: #{tpu_custom_call.1} parent=1 // loop_pre_header
      _
    $region3: #{tpu_custom_call.1} parent=1 // loop_header
      %s16 = sphi 0, %s20
      %p17 = scmp.ge.s32.totalorder %s16, 4
      %s23 = sphi 0, %s35
      %s24 = sphi 0, %s31
      %s25 = sphi 0, %s23
      %s26 = sphi 0, %s24
      %s27 = sphi 0, %s25
      %s28 = sphi 0, %s26
      %s38 = sphi 0, %s40
      %s41 = sphi 0, %s38
      %s42 = sphi 0, %s41
      %s58 = sphi 0, %s42
      %s64 = sphi 0, %s66
      %s67 = sphi 0, %s64
      %s68 = sphi 0, %s67
      %s84 = sphi 0, %s68
      %s90 = sphi 0, %s92
      %s93 = sphi 0, %s90
      %s94 = sphi 0, %s93
      %s110 = sphi 0, %s94
      %s118 = sphi 0, %s120
      %s121 = sphi 0, %s118
      %s122 = sphi 0, %s121
      %s138 = sphi 0, %s122
    $region4: #{tpu_custom_call.1} parent=1 // loop_header_branch
      %19 = sbr.rel (%p17) target = $region8
    $region5: #{tpu_custom_call.1} parent=1 // loop_body
      %s21 = ssub.s32 %s16, 1
      %s22 = ssub.s32 %s16, 2
      %s29 = sadd.s32 1, %s24
      %p30 = scmp.ge.s32.totalorder %s29, 1
      %s31 = scalar_select %p30, 0, %s29
      %s32 = sadd.s32 1, %s23
      %s33 = scalar_select %p30, %s32, %s23
      %p34 = scmp.ge.s32.totalorder %s33, 2
      %s35 = scalar_select %p34, 0, %s33
      %s36 = ssub.s32 %s23, %s35
      %p37 = scmp.eq.s32.totalorder %s36, 0
      %s39 = sadd.s32 %s38, 1
      %s40 = scalar_select %p37, %s38, %s39
      %p43 = pneg %p37
      %p44 = scmp.eq.s32.totalorder %s16, 1
      %p45 = por %p43, %p44
      %p46 = scmp.ne.s32.totalorder %s38, %s41
      %p47 = scmp.eq.s32.totalorder %s16, 0
      %p48 = por %p46, %p47
      %p49 = scmp.ne.s32.totalorder %s38, %s41
      %p50 = scmp.eq.s32.totalorder %s21, 1
      %p51 = por %p49, %p50
      %p52 = scmp.ne.s32.totalorder %s41, %s42
      %p53 = scmp.eq.s32.totalorder %s21, 0
      %p54 = por %p52, %p53
      %p55 = scmp.ne.s32.totalorder %s41, %s42
      %p56 = scmp.eq.s32.totalorder %s22, 1
      %p57 = por %p55, %p56
      %p59 = scmp.ne.s32.totalorder %s42, %s58
      %p60 = scmp.eq.s32.totalorder %s22, 0
      %p61 = por %p59, %p60
      %s62 = ssub.s32 %s24, %s31
      %p63 = scmp.eq.s32.totalorder %s62, 0
      %s65 = sadd.s32 %s64, 1
      %s66 = scalar_select %p63, %s64, %s65
      %p69 = pneg %p63
      %p70 = scmp.eq.s32.totalorder %s16, 1
      %p71 = por %p69, %p70
      %p72 = scmp.ne.s32.totalorder %s64, %s67
      %p73 = scmp.eq.s32.totalorder %s16, 0
      %p74 = por %p72, %p73
      %p75 = scmp.ne.s32.totalorder %s64, %s67
      %p76 = scmp.eq.s32.totalorder %s21, 1
      %p77 = por %p75, %p76
      %p78 = scmp.ne.s32.totalorder %s67, %s68
      %p79 = scmp.eq.s32.totalorder %s21, 0
      %p80 = por %p78, %p79
      %p81 = scmp.ne.s32.totalorder %s67, %s68
      %p82 = scmp.eq.s32.totalorder %s22, 1
      %p83 = por %p81, %p82
      %p85 = scmp.ne.s32.totalorder %s68, %s84
      %p86 = scmp.eq.s32.totalorder %s22, 0
      %p87 = por %p85, %p86
      %s88 = ssub.s32 %s24, %s31
      %p89 = scmp.eq.s32.totalorder %s88, 0
      %s91 = sadd.s32 %s90, 1
      %s92 = scalar_select %p89, %s90, %s91
      %p95 = pneg %p89
      %p96 = scmp.eq.s32.totalorder %s16, 1
      %p97 = por %p95, %p96
      %p98 = scmp.ne.s32.totalorder %s90, %s93
      %p99 = scmp.eq.s32.totalorder %s16, 0
      %p100 = por %p98, %p99
      %p101 = scmp.ne.s32.totalorder %s90, %s93
      %p102 = scmp.eq.s32.totalorder %s21, 1
      %p103 = por %p101, %p102
      %p104 = scmp.ne.s32.totalorder %s93, %s94
      %p105 = scmp.eq.s32.totalorder %s21, 0
      %p106 = por %p104, %p105
      %p107 = scmp.ne.s32.totalorder %s93, %s94
      %p108 = scmp.eq.s32.totalorder %s22, 1
      %p109 = por %p107, %p108
      %p111 = scmp.ne.s32.totalorder %s94, %s110
      %p112 = scmp.eq.s32.totalorder %s22, 0
      %p113 = por %p111, %p112
      %s114 = ssub.s32 %s23, %s35
      %s115 = ssub.s32 %s24, %s31
      %s116 = sor.u32 %s114, %s115
      %p117 = scmp.eq.s32.totalorder %s116, 0
      %s119 = sadd.s32 %s118, 1
      %s120 = scalar_select %p117, %s118, %s119
      %p123 = pneg %p117
      %p124 = scmp.eq.s32.totalorder %s16, 1
      %p125 = por %p123, %p124
      %p126 = scmp.ne.s32.totalorder %s118, %s121
      %p127 = scmp.eq.s32.totalorder %s16, 0
      %p128 = por %p126, %p127
      %p129 = scmp.ne.s32.totalorder %s118, %s121
      %p130 = scmp.eq.s32.totalorder %s21, 1
      %p131 = por %p129, %p130
      %p132 = scmp.ne.s32.totalorder %s121, %s122
      %p133 = scmp.eq.s32.totalorder %s21, 0
      %p134 = por %p132, %p133
      %p135 = scmp.ne.s32.totalorder %s121, %s122
      %p136 = scmp.eq.s32.totalorder %s22, 1
      %p137 = por %p135, %p136
      %p139 = scmp.ne.s32.totalorder %s122, %s138
      %p140 = scmp.eq.s32.totalorder %s22, 0
      %p141 = por %p139, %p140
      %p142 = scmp.le.s32.totalorder 1, %s16
      %p143 = scmp.lt.s32.totalorder %s16, 3
      %p144 = pnand %p142, %p143
      %p145 = pneg %p144
      // Predicated region
      $region9: #{tpu_custom_call.1} parent=5 // pred_check
        _
      $region10: #{tpu_custom_call.1} parent=5 // pred_check_branch
        %147 = sbr.rel (%p144) target = $region12
      $region11: #{tpu_custom_call.1} parent=5 // pred_region
        %s148 = ssub.s32 %s16, 1
        // Predicated region
        $region13: #{tpu_custom_call.1} parent=11 // pred_check
          %p149 = pneg %p80
        $region14: #{tpu_custom_call.1} parent=11 // pred_check_branch
          %151 = sbr.rel (%p149) target = $region16
        $region15: #{tpu_custom_call.1} parent=11 // pred_region
          %s153 = ssub.s32 2048, 2048
          %154 = vsyncadd [#allocation6], %s153
          %s155 = smul.addr %s26, 128
          %s156 = scalar_lea.hbm %s1, %s155
          %s157 = sshll.u32 [#allocation5], 4
          %s158 = int_to_ptr.vmem [resolvable:$true] %s157
          %163 = dma.hbm_to_vmem [thread:$0]  %s156, 2048, %s158, [#allocation6], 128, 128, 8
        $region16: #{tpu_custom_call.1} parent=11 // pred_fallthru
          _
        // Predicated region
        $region17: #{tpu_custom_call.1} parent=11 // pred_check
          %p164 = pneg %p106
        $region18: #{tpu_custom_call.1} parent=11 // pred_check_branch
          %166 = sbr.rel (%p164) target = $region20
        $region19: #{tpu_custom_call.1} parent=11 // pred_region
          %p167 = scmp.lt.s32.totalorder %s26, 0
          %s168 = scalar_select %p167, %s26, 0
          %s169 = scalar_lea.vmem %s2, %s168
        $region20: #{tpu_custom_call.1} parent=11 // pred_fallthru
          _
      $region12: #{tpu_custom_call.1} parent=5 // pred_fallthru
        _
      %p170 = scmp.lt.s32.totalorder %s16, 2
      // Predicated region
      $region21: #{tpu_custom_call.1} parent=5 // pred_check
        %p171 = pneg %p170
      $region22: #{tpu_custom_call.1} parent=5 // pred_check_branch
        %173 = sbr.rel (%p171) target = $region24
      $region23: #{tpu_custom_call.1} parent=5 // pred_region
        // Predicated region
        $region25: #{tpu_custom_call.1} parent=23 // pred_check
          %p174 = pneg %p48
        $region26: #{tpu_custom_call.1} parent=23 // pred_check_branch
          %176 = sbr.rel (%p174) target = $region28
        $region27: #{tpu_custom_call.1} parent=23 // pred_region
          %s177 = sand.u32 %s38, 1
          %s178 = scalar_lea.sflag [#allocation3], %s177
          %s179 = sand.u32 %s38, 1
          %s180 = smul.addr %s179, 8
          %s181 = scalar_lea.vmem [#allocation2], %s180
          %s183 = ssub.s32 128, 128
          %184 = vsyncadd %s178, %s183
          %s185 = smul.addr %s23, 128
          %s186 = scalar_lea.hbm %s0, %s185
          %s188 = sshll.u32 %s181, 4
          %s189 = int_to_ptr.vmem [resolvable:$true] %s188
          %191 = dma.hbm_to_vmem [thread:$0]  %s186, 128, %s189, %s178
        $region28: #{tpu_custom_call.1} parent=23 // pred_fallthru
          _
      $region24: #{tpu_custom_call.1} parent=5 // pred_fallthru
        _
      %p192 = scmp.le.s32.totalorder 1, %s16
      %p193 = scmp.lt.s32.totalorder %s16, 3
      %p194 = pnand %p192, %p193
      %p195 = pneg %p194
      // Predicated region
      $region29: #{tpu_custom_call.1} parent=5 // pred_check
        _
      $region30: #{tpu_custom_call.1} parent=5 // pred_check_branch
        %197 = sbr.rel (%p194) target = $region32
      $region31: #{tpu_custom_call.1} parent=5 // pred_region
        %s198 = ssub.s32 %s16, 1
        %s199 = sand.u32 %s41, 1
        %s200 = scalar_lea.sflag [#allocation3], %s199
        %s201 = sand.u32 %s41, 1
        %s202 = smul.addr %s201, 8
        %s203 = scalar_lea.vmem [#allocation2], %s202
        // Predicated region
        $region33: #{tpu_custom_call.1} parent=31 // pred_check
          %p204 = pneg %p54
        $region34: #{tpu_custom_call.1} parent=31 // pred_check_branch
          %206 = sbr.rel (%p204) target = $region36
        $region35: #{tpu_custom_call.1} parent=31 // pred_region
          %207 = dma.done %s200, 128
        $region36: #{tpu_custom_call.1} parent=31 // pred_fallthru
          _
        // Predicated region
        $region37: #{tpu_custom_call.1} parent=31 // pred_check
          %p208 = pneg %p80
        $region38: #{tpu_custom_call.1} parent=31 // pred_check_branch
          %210 = sbr.rel (%p208) target = $region40
        $region39: #{tpu_custom_call.1} parent=31 // pred_region
          %211 = dma.done [#allocation6], 2048
        $region40: #{tpu_custom_call.1} parent=31 // pred_fallthru
          _
        %s212 = sand.u32 %s41, 1
        %s213 = scalar_lea.sflag [#allocation3], %s212
        %s214 = sand.u32 %s41, 1
        %s215 = smul.addr %s214, 8
        %s216 = scalar_lea.vmem [#allocation2], %s215
        %p217 = pneg %p54
        %p218 = pneg %p51
        %p219 = pneg %p80
        %p220 = pneg %p77
        %p221 = scmp.lt.s32.totalorder %s26, 0
        %s222 = scalar_select %p221, %s26, 0
        %s223 = scalar_lea.vmem %s2, %s222
        %p224 = pneg %p106
        %p225 = pneg %p103
        %p226 = pneg %p134
        %p227 = pneg %p131
        %s228 = sand.u32 %s121, 1
        %s229 = scalar_lea.sflag [#allocation4], %s228
        %s230 = sand.u32 %s121, 1
        %s231 = smul.addr %s230, 8
        %s232 = scalar_lea.vmem [#allocation7], %s231
        %p233 = scmp.lt.s32.totalorder %s26, 0
        %s234 = scalar_select %p233, %s26, 0
        %s235 = scalar_lea.vmem %s2, %s234
        %v236 = vld [vmem:[%s203] sm:$0xff]
        %v237 = vld [vmem:[#allocation5] sm:$0xff]
        %v238 = vld [vmem:[#allocation5 + $0x8] sm:$0xff]
        %v239 = vld [vmem:[#allocation5 + $0x10] sm:$0xff]
        %v240 = vld [vmem:[#allocation5 + $0x18] sm:$0xff]
        %v241 = vld [vmem:[#allocation5 + $0x20] sm:$0xff]
        %v242 = vld [vmem:[#allocation5 + $0x28] sm:$0xff]
        %v243 = vld [vmem:[#allocation5 + $0x30] sm:$0xff]
        %v244 = vld [vmem:[#allocation5 + $0x38] sm:$0xff]
        %v245 = vld [vmem:[#allocation5 + $0x40] sm:$0xff]
        %v246 = vld [vmem:[#allocation5 + $0x48] sm:$0xff]
        %v247 = vld [vmem:[#allocation5 + $0x50] sm:$0xff]
        %v248 = vld [vmem:[#allocation5 + $0x58] sm:$0xff]
        %v249 = vld [vmem:[#allocation5 + $0x60] sm:$0xff]
        %v250 = vld [vmem:[#allocation5 + $0x68] sm:$0xff]
        %v251 = vld [vmem:[#allocation5 + $0x70] sm:$0xff]
        %v252 = vld [vmem:[#allocation5 + $0x78] sm:$0xff]
        %v253 = vld [vmem:[%s235] sm:$0x1]
        %v255 = vlaneseq
        %v256 = vshrl.u32 %v255, 7
        %v257 = vsub.s32 0, %v256
        %v258 = vrot.slane %v253, %v257
        %260 = vmatprep.subr.mxu0 0.0
        %261 = vmatpush1.msra.mxu0 %v237
        %262 = vmatprep.subr.mxu0 0.0
        %263 = vmatpush1.msra.mxu0 %v238
        %264 = vmatprep.subr.mxu0 0.0
        %265 = vmatpush1.msra.mxu0 %v239
        %266 = vmatprep.subr.mxu0 0.0
        %267 = vmatpush1.msra.mxu0 %v240
        %268 = vmatprep.subr.mxu0 0.0
        %269 = vmatpush1.msra.mxu0 %v241
        %270 = vmatprep.subr.mxu0 0.0
        %271 = vmatpush1.msra.mxu0 %v242
        %272 = vmatprep.subr.mxu0 0.0
        %273 = vmatpush1.msra.mxu0 %v243
        %274 = vmatprep.subr.mxu0 0.0
        %275 = vmatpush1.msra.mxu0 %v244
        %276 = vmatprep.subr.mxu0 0.0
        %277 = vmatpush1.msra.mxu0 %v245
        %278 = vmatprep.subr.mxu0 0.0
        %279 = vmatpush1.msra.mxu0 %v246
        %280 = vmatprep.subr.mxu0 0.0
        %281 = vmatpush1.msra.mxu0 %v247
        %282 = vmatprep.subr.mxu0 0.0
        %283 = vmatpush1.msra.mxu0 %v248
        %284 = vmatprep.subr.mxu0 0.0
        %285 = vmatpush1.msra.mxu0 %v249
        %286 = vmatprep.subr.mxu0 0.0
        %287 = vmatpush1.msra.mxu0 %v250
        %288 = vmatprep.subr.mxu0 0.0
        %289 = vmatpush1.msra.mxu0 %v251
        %290 = vmatprep.subr.mxu0 0.0
        %291 = vmatpush1.msra.mxu0 %v252
        %292 = vmatprep.subr.mxu0 0.0
        %293 = vmatpush1.msra.mxu0 0.0
        %294 = vmatprep.subr.mxu0 0.0
        %295 = vmatpush1.msra.mxu0 0.0
        %296 = vmatprep.subr.mxu0 0.0
        %297 = vmatpush1.msra.mxu0 0.0
        %298 = vmatprep.subr.mxu0 0.0
        %299 = vmatpush1.msra.mxu0 0.0
        %300 = vmatprep.subr.mxu0 0.0
        %301 = vmatpush1.msra.mxu0 0.0
        %302 = vmatprep.subr.mxu0 0.0
        %303 = vmatpush1.msra.mxu0 0.0
        %304 = vmatprep.subr.mxu0 0.0
        %305 = vmatpush1.msra.mxu0 0.0
        %306 = vmatprep.subr.mxu0 0.0
        %307 = vmatpush1.msra.mxu0 0.0
        %308 = vmatprep.subr.mxu0 0.0
        %309 = vmatpush1.msra.mxu0 0.0
        %310 = vmatprep.subr.mxu0 0.0
        %311 = vmatpush1.msra.mxu0 0.0
        %312 = vmatprep.subr.mxu0 0.0
        %313 = vmatpush1.msra.mxu0 0.0
        %314 = vmatprep.subr.mxu0 0.0
        %315 = vmatpush1.msra.mxu0 0.0
        %316 = vmatprep.subr.mxu0 0.0
        %317 = vmatpush1.msra.mxu0 0.0
        %318 = vmatprep.subr.mxu0 0.0
        %319 = vmatpush1.msra.mxu0 0.0
        %320 = vmatprep.subr.mxu0 0.0
        %321 = vmatpush1.msra.mxu0 0.0
        %322 = vmatprep.subr.mxu0 0.0
        %323 = vmatpush1.msra.mxu0 0.0
        %324 = vmatprep.mubr.f32.mxu0 0.0
        %325 = vmatmul.mubr.f32.gmra.mrb[0].mxu0 %v236
        %v326 = vpop.f32.mrb[0].mxu0
        %v327 = vadd.f32 %v258, %v326
        %v328 = vpop.f32.mrb[0].mxu0
        %329 = vdwg.mxu0
        %330 = vst [vmem:[%s232] sm:$0xff] %v327
        %s331 = sand.u32 %s121, 1
        %s332 = scalar_lea.sflag [#allocation4], %s331
        %s333 = sand.u32 %s121, 1
        %s334 = smul.addr %s333, 8
        %s335 = scalar_lea.vmem [#allocation7], %s334
        // Predicated region
        $region41: #{tpu_custom_call.1} parent=31 // pred_check
          %p336 = pneg %p131
        $region42: #{tpu_custom_call.1} parent=31 // pred_check_branch
          %338 = sbr.rel (%p336) target = $region44
        $region43: #{tpu_custom_call.1} parent=31 // pred_region
          %s340 = ssub.s32 128, 128
          %341 = vsyncadd %s332, %s340
          %s342 = sadd.s32 %s26, %s25
          %s343 = smul.addr %s342, 128
          %s344 = scalar_lea.hbm %s3, %s343
          %s346 = sshll.u32 %s335, 4
          %s347 = int_to_ptr.vmem [resolvable:$true] %s346
          %349 = dma.vmem_to_hbm [thread:$0]  %s347, 128, %s344, %s332
        $region44: #{tpu_custom_call.1} parent=31 // pred_fallthru
          _
      $region32: #{tpu_custom_call.1} parent=5 // pred_fallthru
        _
      %p350 = scmp.le.s32.totalorder 2, %s16
      // Predicated region
      $region45: #{tpu_custom_call.1} parent=5 // pred_check
        %p351 = pneg %p350
      $region46: #{tpu_custom_call.1} parent=5 // pred_check_branch
        %353 = sbr.rel (%p351) target = $region48
      $region47: #{tpu_custom_call.1} parent=5 // pred_region
        %s354 = ssub.s32 %s16, 2
        // Predicated region
        $region49: #{tpu_custom_call.1} parent=47 // pred_check
          %p355 = pneg %p137
        $region50: #{tpu_custom_call.1} parent=47 // pred_check_branch
          %357 = sbr.rel (%p355) target = $region52
        $region51: #{tpu_custom_call.1} parent=47 // pred_region
          %s358 = sand.u32 %s122, 1
          %s359 = scalar_lea.sflag [#allocation4], %s358
          %s360 = sand.u32 %s122, 1
          %s361 = smul.addr %s360, 8
          %s362 = scalar_lea.vmem [#allocation7], %s361
          %363 = dma.done %s359, 128
        $region52: #{tpu_custom_call.1} parent=47 // pred_fallthru
          _
      $region48: #{tpu_custom_call.1} parent=5 // pred_fallthru
        _
    $region6: #{tpu_custom_call.1} parent=1 // loop_footer
      %s20 = sadd.s32 1, %s16
    $region7: #{tpu_custom_call.1} parent=1 // loop_footer_branch
      %15 = sbr.rel target = $region3
    $region8: #{tpu_custom_call.1} parent=1 // loop_exit
      _
    %364 = vsyncpa [#allocation3], 1
    %s365 = scalar_lea.sflag [#allocation3], 1
    %366 = vsyncpa %s365, 1
    %367 = vsyncpa [#allocation6], 1
    %368 = vsyncpa [#allocation4], 1
    %s369 = scalar_lea.sflag [#allocation4], 1
    %370 = vsyncpa %s369, 1

</llo_original>
